<compile_context>
chip_gen: v6e
topology: v6e:2x2x1
jax: 0.10.0
libtpu: 0.0.40
codegen_flags: <defaults>
</compile_context>

<pallas_src>
import jax
import jax.numpy as jnp
from jax.experimental import pallas as pl
from jax.experimental.pallas import tpu as pltpu

_MIB = 1024 * 1024


def _log_softmax_kernel(x_ref, o_ref):
    # Numerically stable log-softmax over the last axis of the tile (f32 compute).
    x = x_ref[...].astype(jnp.float32)
    m = jnp.max(x, axis=-1, keepdims=True)
    s = x - m
    lse = jnp.log(jnp.sum(jnp.exp(s), axis=-1, keepdims=True))
    o_ref[...] = (s - lse).astype(o_ref.dtype)


def _round_up(n, m):
    return ((n + m - 1) // m) * m


def _sublane(dtype):
    # Native sublane packing: 8 rows for 4-byte, 16 for 2-byte, 32 for 1-byte dtypes.
    itemsize = jnp.dtype(dtype).itemsize
    return max(8, 32 // itemsize)


def _chip_info():
    """Returns (vmem_capacity_bytes, num_tensorcores) with conservative fallbacks."""
    cap = None
    cores = None
    try:
        info = pltpu.get_tpu_info()
        cap = getattr(info, "vmem_capacity_bytes", None)
        for name in ("num_tensorcores", "tensorcores_per_chip", "num_cores"):
            v = getattr(info, name, None)
            if isinstance(v, int) and v > 0:
                cores = v
                break
    except Exception:
        pass
    if not cap:
        cap = 64 * _MIB  # conservative: v7x has the smallest per-TC VMEM
    if not cores:
        # Only v7x (64 MiB VMEM / TC) has 2 TensorCores per chip.
        cores = 2 if cap <= 64 * _MIB else 1
    return int(cap), int(cores)


def log_softmax(x, *, block_rows=None, donate_input=False):
    """Applies log_softmax along the last axis of a 2-D (batch, dim) array.

    Set donate_input=True only when the caller donates x (jit donate_argnums);
    otherwise XLA inserts a defensive copy and the alias buys nothing.
    """
    B, D = x.shape
    itemsize = jnp.dtype(x.dtype).itemsize
    sub = _sublane(x.dtype)
    cap, cores = _chip_info()

    # Per-row VMEM footprint of one block:
    #   double-buffered in + out tiles (2 * 2) in the input dtype
    #   + ~3 live f32 compute temporaries (x, s, exp(s)) of the same width.
    per_row_bytes = D * (4 * itemsize + 3 * 4)

    # Per-generation VMEM budget for the whole pipeline (well under limits).
    budget = 16 * _MIB if cap <= 64 * _MIB else 32 * _MIB

    if block_rows is None:
        max_rows = max(sub, (budget // per_row_bytes) // sub * sub)
        block_rows = min(max_rows, _round_up(B, sub))
        # Megacore: on 2-TC chips keep >= 2 grid steps per core so each core
        # still pipelines DMA against compute.  On 1-TC chips a split only
        # adds per-step overhead, so skip it.
        min_steps = 2 * cores
        if cores > 1 and pl.cdiv(B, block_rows) < min_steps and B > sub * min_steps:
            block_rows = _round_up(pl.cdiv(B, min_steps), sub)
    block_rows = _round_up(max(1, int(block_rows)), sub)

    grid_rows = pl.cdiv(B, block_rows)

    # Scoped VMEM limit: I/O double buffers + f32 temporaries + slack,
    # clamped below physical capacity (v7x has only 64 MiB per TC).
    tile_bytes = block_rows * D * itemsize
    f32_tmp_bytes = 3 * block_rows * D * 4
    vmem_limit = 4 * tile_bytes + f32_tmp_bytes + 4 * _MIB
    vmem_limit = int(max(16 * _MIB, min(vmem_limit, (cap * 3) // 4)))

    cost = pl.CostEstimate(
        flops=5 * B * D,                      # max, sub, sum, sub, cast-ish
        transcendentals=B * D + B,            # exp per element + log per row
        bytes_accessed=2 * B * D * itemsize,  # read + write
    )

    out = pl.pallas_call(
        _log_softmax_kernel,
        out_shape=jax.ShapeDtypeStruct((B, D), x.dtype),
        grid_spec=pltpu.PrefetchScalarGridSpec(
            num_scalar_prefetch=0,
            grid=(grid_rows,),
            in_specs=[pl.BlockSpec((block_rows, D), lambda i: (i, 0))],
            out_specs=pl.BlockSpec((block_rows, D), lambda i: (i, 0)),
        ),
        compiler_params=pltpu.CompilerParams(
            dimension_semantics=("parallel",),
            vmem_limit_bytes=vmem_limit,
        ),
        input_output_aliases=({0: 0} if donate_input else {}),
        cost_estimate=cost,
    )(x)
    return out


if __name__ == "__main__":
    key = jax.random.PRNGKey(0)
    k1, k2 = jax.random.split(key)

    # Small-shape stand-ins for the spec's (batch_size, 16384) input.
    # Case 1: ragged batch — last block overhangs; Pallas masks OOB writes.
    x1 = jax.random.normal(k1, (12, 1024), dtype=jnp.float32)
    out1 = jax.block_until_ready(log_softmax(x1))
    ref1 = jax.nn.log_softmax(x1, axis=-1)
    assert out1.shape == x1.shape and out1.dtype == x1.dtype
    assert jnp.max(jnp.abs(out1 - ref1)) < 1e-5

    # Case 2: explicit block_rows covering the whole batch in one tile.
    x2 = jax.random.normal(k2, (16, 2048), dtype=jnp.float32)
    out2 = jax.block_until_ready(log_softmax(x2, block_rows=16))
    ref2 = jax.nn.log_softmax(x2, axis=-1)
    assert out2.shape == x2.shape and out2.dtype == x2.dtype
    assert jnp.max(jnp.abs(out2 - ref2)) < 1e-5

    print("KERNEL_OK")
</pallas_src>

<mosaic_0001>
module attributes {stable_mosaic.version = 11 : i64} {
  func.func @_log_softmax_kernel(%arg0: i32, %arg1: memref<16x1024xf32, #tpu.memory_space<vmem>>, %arg2: memref<16x1024xf32, #tpu.memory_space<vmem>>) attributes {dimension_semantics = [#tpu.dimension_semantics<parallel>], iteration_bounds = array<i64: 1>, scalar_prefetch = 0 : i64, scratch_operands = 0 : i64, tpu.core_type = #tpu.core_type<tc>, window_params = [{transform_indices = @transform_0, window_bounds = array<i64: 16, 1024>}, {transform_indices = @transform_1, window_bounds = array<i64: 16, 1024>}]} {
    %c0 = arith.constant 0 : index
    %c0_0 = arith.constant 0 : index
    %0 = vector.load %arg1[%c0, %c0_0] : memref<16x1024xf32, #tpu.memory_space<vmem>>, vector<16x1024xf32>
    %cst = arith.constant dense<0xFF800000> : vector<16xf32>
    %1 = vector.multi_reduction <maximumf>, %0, %cst [1] : vector<16x1024xf32> to vector<16xf32>
    %2 = vector.shape_cast %1 : vector<16xf32> to vector<16x1xf32>
    %3 = vector.broadcast %2 : vector<16x1xf32> to vector<16x1024xf32>
    %4 = arith.subf %0, %3 : vector<16x1024xf32>
    %5 = math.exp %4 : vector<16x1024xf32>
    %cst_1 = arith.constant dense<0.000000e+00> : vector<16xf32>
    %6 = vector.multi_reduction <add>, %5, %cst_1 [1] : vector<16x1024xf32> to vector<16xf32>
    %7 = vector.shape_cast %6 : vector<16xf32> to vector<16x1xf32>
    %8 = math.log %7 : vector<16x1xf32>
    %9 = vector.broadcast %8 : vector<16x1xf32> to vector<16x1024xf32>
    %10 = arith.subf %4, %9 : vector<16x1024xf32>
    %c0_2 = arith.constant 0 : index
    %c0_3 = arith.constant 0 : index
    %11 = vector.load %arg2[%c0_2, %c0_3] : memref<16x1024xf32, #tpu.memory_space<vmem>>, vector<16x1024xf32>
    tpu.vector_store %arg2[%c0_2, %c0_3], %10 {strides = array<i32>} : memref<16x1024xf32, #tpu.memory_space<vmem>>, vector<16x1024xf32>,
    return
  }
  func.func @transform_0(%arg0: i32) -> (i32, i32) {
    %c0_i32 = arith.constant 0 : i32
    %c0_i32_0 = arith.constant 0 : i32
    return %arg0, %c0_i32 : i32, i32
  }
  func.func @transform_1(%arg0: i32) -> (i32, i32) {
    %c0_i32 = arith.constant 0 : i32
    %c0_i32_0 = arith.constant 0 : i32
    return %arg0, %c0_i32 : i32, i32
  }
}

</mosaic_0001>

<llo_original>
// kernel: tpu_custom_call.1
$region0: #{tpu_custom_call.1}
  #allocation0 [shape = 'u32[]', space=smem, size = 0x4, offset = 0x4, fixed_abs, tag = 'smem constant byte address 0x4 - core index']
  #allocation1 [shape = 'u32[144,128]{1,0:T(1,128)}', space=vmem, size = 0x12000, scoped, tag = 'internal scratch']
  %s0 = inlined_call_operand.hbm [shape: f32[12,1024], index: 0, kind: input, shape index: {}]
  %s1 = inlined_call_operand.hbm [shape: f32[12,1024], index: 1, kind: output, shape index: {}]
  %s2 = sld [smem:[#allocation0]]
  $region18: #{tpu_custom_call.1} parent=0
    _
  %s4 = ssub.s32 1, %s2
  %s5 = scalar_select 0, %s4, %s2
  $region1: #{tpu_custom_call.1} parent=0
    #allocation2 [shape = 'u8[65536]{0}', space=vmem, size = 0x10000, scoped, tag = 'input window, operand 0, single buffered']
    #allocation3 [shape = 's32[1]{0}', space=sflag, size = 0x4, scoped, tag = 'scoped memory for tpu_custom_call.1']
    #allocation4 [shape = 's32[1]{0}', space=sflag, size = 0x4, scoped, tag = 'scoped memory for tpu_custom_call.1']
    #allocation5 [shape = 'u8[65536]{0}', space=vmem, size = 0x10000, scoped, tag = 'output window, operand 0, single buffered']
    %6 = vsyncpa [#allocation3], 0
    %7 = vsyncpa [#allocation4], 0
    // Predicated region
    $region2: #{tpu_custom_call.1} parent=1 // pred_check
      _
    $region3: #{tpu_custom_call.1} parent=1 // pred_check_branch
      %9 = sbr.rel (0) target = $region5
    $region4: #{tpu_custom_call.1} parent=1 // pred_region
      %s11 = ssub.s32 2048, 2048
      %12 = vsyncadd [#allocation3], %s11
      %s13 = sshll.u32 [#allocation2], 4
      %s14 = int_to_ptr.vmem [resolvable:$true] %s13
      %19 = dma.hbm_to_vmem [thread:$0]  %s0, 2048, %s14, [#allocation3], 1024, 1024, 64
    $region5: #{tpu_custom_call.1} parent=1 // pred_fallthru
      _
    // Predicated region
    $region6: #{tpu_custom_call.1} parent=1 // pred_check
      _
    $region7: #{tpu_custom_call.1} parent=1 // pred_check_branch
      %21 = sbr.rel (0) target = $region9
    $region8: #{tpu_custom_call.1} parent=1 // pred_region
      %22 = dma.done [#allocation3], 2048
    $region9: #{tpu_custom_call.1} parent=1 // pred_fallthru
      _
    %v23 = vld [vmem:[#allocation2] sm:$0xff]
    %v24 = vld [vmem:[#allocation2 + $0x8] sm:$0xff]
    %v25 = vld [vmem:[#allocation2 + $0x10] sm:$0xff]
    %v26 = vld [vmem:[#allocation2 + $0x18] sm:$0xff]
    %v27 = vld [vmem:[#allocation2 + $0x20] sm:$0xff]
    %v28 = vld [vmem:[#allocation2 + $0x28] sm:$0xff]
    %v29 = vld [vmem:[#allocation2 + $0x30] sm:$0xff]
    %v30 = vld [vmem:[#allocation2 + $0x38] sm:$0xff]
    %v31 = vld [vmem:[#allocation2 + $0x40] sm:$0xff]
    %v32 = vld [vmem:[#allocation2 + $0x48] sm:$0xff]
    %v33 = vld [vmem:[#allocation2 + $0x50] sm:$0xff]
    %v34 = vld [vmem:[#allocation2 + $0x58] sm:$0xff]
    %v35 = vld [vmem:[#allocation2 + $0x60] sm:$0xff]
    %v36 = vld [vmem:[#allocation2 + $0x68] sm:$0xff]
    %v37 = vld [vmem:[#allocation2 + $0x70] sm:$0xff]
    %v38 = vld [vmem:[#allocation2 + $0x78] sm:$0xff]
    %v39 = vmax.f32 %v23, %v25
    %v40 = vmax.f32 %v24, %v26
    %v41 = vmax.f32 %v39, %v27
    %v42 = vmax.f32 %v40, %v28
    %v43 = vmax.f32 %v41, %v29
    %v44 = vmax.f32 %v42, %v30
    %v45 = vmax.f32 %v43, %v44
    %46 = vmax.xlane.f32.xlu0 %v45
    %v47 = vpop.xlane.xlu0 %46
    %v48 = vmax.f32 %v31, %v33
    %v49 = vmax.f32 %v32, %v34
    %v50 = vmax.f32 %v48, %v35
    %v51 = vmax.f32 %v49, %v36
    %v52 = vmax.f32 %v50, %v37
    %v53 = vmax.f32 %v51, %v38
    %v54 = vmax.f32 %v52, %v53
    %55 = vmax.xlane.f32.xlu0 %v54
    %v56 = vpop.xlane.xlu0 %55
    %v57 = vsub.f32 %v23, %v47
    %v58 = vsub.f32 %v24, %v47
    %v59 = vsub.f32 %v25, %v47
    %v60 = vsub.f32 %v26, %v47
    %v61 = vsub.f32 %v27, %v47
    %v62 = vsub.f32 %v28, %v47
    %v63 = vsub.f32 %v29, %v47
    %v64 = vsub.f32 %v30, %v47
    %v65 = vsub.f32 %v31, %v56
    %v66 = vsub.f32 %v32, %v56
    %v67 = vsub.f32 %v33, %v56
    %v68 = vsub.f32 %v34, %v56
    %v69 = vsub.f32 %v35, %v56
    %v70 = vsub.f32 %v36, %v56
    %v71 = vsub.f32 %v37, %v56
    %v72 = vsub.f32 %v38, %v56
    %v73 = vmul.f32 %v57, 1.442695
    %v74 = vpow.pop %v73
    %v75 = vmul.f32 %v58, 1.442695
    %v76 = vpow.pop %v75
    %v77 = vmul.f32 %v59, 1.442695
    %v78 = vpow.pop %v77
    %v79 = vmul.f32 %v60, 1.442695
    %v80 = vpow.pop %v79
    %v81 = vmul.f32 %v61, 1.442695
    %v82 = vpow.pop %v81
    %v83 = vmul.f32 %v62, 1.442695
    %v84 = vpow.pop %v83
    %v85 = vmul.f32 %v63, 1.442695
    %v86 = vpow.pop %v85
    %v87 = vmul.f32 %v64, 1.442695
    %v88 = vpow.pop %v87
    %v89 = vmul.f32 %v65, 1.442695
    %v90 = vpow.pop %v89
    %v91 = vmul.f32 %v66, 1.442695
    %v92 = vpow.pop %v91
    %v93 = vmul.f32 %v67, 1.442695
    %v94 = vpow.pop %v93
    %v95 = vmul.f32 %v68, 1.442695
    %v96 = vpow.pop %v95
    %v97 = vmul.f32 %v69, 1.442695
    %v98 = vpow.pop %v97
    %v99 = vmul.f32 %v70, 1.442695
    %v100 = vpow.pop %v99
    %v101 = vmul.f32 %v71, 1.442695
    %v102 = vpow.pop %v101
    %v103 = vmul.f32 %v72, 1.442695
    %v104 = vpow.pop %v103
    %v105 = vadd.f32 %v74, %v76
    %v106 = vadd.f32 %v105, %v78
    %v107 = vadd.f32 %v106, %v80
    %v108 = vadd.f32 %v107, %v82
    %v109 = vadd.f32 %v108, %v84
    %v110 = vadd.f32 %v109, %v86
    %v111 = vadd.f32 %v110, %v88
    %112 = vadd.xlane.f32.xlu0 %v111
    %v113 = vpop.xlane.xlu0 %112
    %v114 = vadd.f32 %v90, %v92
    %v115 = vadd.f32 %v114, %v94
    %v116 = vadd.f32 %v115, %v96
    %v117 = vadd.f32 %v116, %v98
    %v118 = vadd.f32 %v117, %v100
    %v119 = vadd.f32 %v118, %v102
    %v120 = vadd.f32 %v119, %v104
    %121 = vadd.xlane.f32.xlu0 %v120
    %v122 = vpop.xlane.xlu0 %121
    %v123 = vlog2.pop %v113
    %v124 = vmul.f32 %v123, 0.6931472
    %v125 = vlog2.pop %v122
    %v126 = vmul.f32 %v125, 0.6931472
    %v127 = vsub.f32 %v57, %v124
    %v128 = vsub.f32 %v58, %v124
    %v129 = vsub.f32 %v59, %v124
    %v130 = vsub.f32 %v60, %v124
    %v131 = vsub.f32 %v61, %v124
    %v132 = vsub.f32 %v62, %v124
    %v133 = vsub.f32 %v63, %v124
    %v134 = vsub.f32 %v64, %v124
    %v135 = vsub.f32 %v65, %v126
    %v136 = vsub.f32 %v66, %v126
    %v137 = vsub.f32 %v67, %v126
    %v138 = vsub.f32 %v68, %v126
    %v139 = vsub.f32 %v69, %v126
    %v140 = vsub.f32 %v70, %v126
    %v141 = vsub.f32 %v71, %v126
    %v142 = vsub.f32 %v72, %v126
    %143 = vst [vmem:[#allocation5] sm:$0xff] %v127
    %144 = vst [vmem:[#allocation5 + $0x8] sm:$0xff] %v128
    %145 = vst [vmem:[#allocation5 + $0x10] sm:$0xff] %v129
    %146 = vst [vmem:[#allocation5 + $0x18] sm:$0xff] %v130
    %147 = vst [vmem:[#allocation5 + $0x20] sm:$0xff] %v131
    %148 = vst [vmem:[#allocation5 + $0x28] sm:$0xff] %v132
    %149 = vst [vmem:[#allocation5 + $0x30] sm:$0xff] %v133
    %150 = vst [vmem:[#allocation5 + $0x38] sm:$0xff] %v134
    %151 = vst [vmem:[#allocation5 + $0x40] sm:$0xff] %v135
    %152 = vst [vmem:[#allocation5 + $0x48] sm:$0xff] %v136
    %153 = vst [vmem:[#allocation5 + $0x50] sm:$0xff] %v137
    %154 = vst [vmem:[#allocation5 + $0x58] sm:$0xff] %v138
    %155 = vst [vmem:[#allocation5 + $0x60] sm:$0xff] %v139
    %156 = vst [vmem:[#allocation5 + $0x68] sm:$0xff] %v140
    %157 = vst [vmem:[#allocation5 + $0x70] sm:$0xff] %v141
    %158 = vst [vmem:[#allocation5 + $0x78] sm:$0xff] %v142
    // Predicated region
    $region10: #{tpu_custom_call.1} parent=1 // pred_check
      _
    $region11: #{tpu_custom_call.1} parent=1 // pred_check_branch
      %160 = sbr.rel (0) target = $region13
    $region12: #{tpu_custom_call.1} parent=1 // pred_region
      %s162 = ssub.s32 2048, 2048
      %163 = vsyncadd [#allocation4], %s162
      %s164 = sshll.u32 [#allocation5], 4
      %s165 = int_to_ptr.vmem [resolvable:$true] %s164
      %170 = dma.vmem_to_hbm [thread:$0]  %s165, 2048, %s1, [#allocation4], 1024, 1024, 64
    $region13: #{tpu_custom_call.1} parent=1 // pred_fallthru
      _
    // Predicated region
    $region14: #{tpu_custom_call.1} parent=1 // pred_check
      _
    $region15: #{tpu_custom_call.1} parent=1 // pred_check_branch
      %172 = sbr.rel (0) target = $region17
    $region16: #{tpu_custom_call.1} parent=1 // pred_region
      %173 = dma.done [#allocation4], 2048
    $region17: #{tpu_custom_call.1} parent=1 // pred_fallthru
      _
    %174 = vsyncpa [#allocation3], 1
    %175 = vsyncpa [#allocation4], 1

</llo_original>
